<compile_context>
chip_gen: v7x
topology: tpu7x:2x2x1
jax: 0.10.0
libtpu: 0.0.40
codegen_flags: <defaults>
</compile_context>

<pallas_src>
import functools

import jax
import jax.numpy as jnp
from jax.experimental import pallas as pl
from jax.experimental.pallas import tpu as pltpu


def _round_up(x: int, m: int) -> int:
    return (x + m - 1) // m * m


def _vmem_capacity_bytes() -> int:
    """Per-core VMEM capacity; conservative fallback = 64 MiB (v7x)."""
    try:
        return int(pltpu.get_tpu_info().vmem_capacity_bytes)
    except Exception:
        return 64 * 1024 * 1024


def _lsce_kernel(x_ref, tgt_ref, smooth_ref, nll_ref, *, n_valid: int, ragged: bool):
    """Partial sums for one row tile.

    x_ref:   (TILE_N, C) logits block, kept in its input dtype.
    tgt_ref: (TILE_N, 1) int32 target block.
    smooth_ref, nll_ref: (1, 1) SMEM per-tile partial sums (f32).
    """
    x = x_ref[...]                                           # (T, C), input dtype
    t, c = x.shape

    if ragged:
        # Mask padding rows of the partial last block BEFORE max/exp so
        # undefined data cannot produce inf/NaN.
        row = (jax.lax.broadcasted_iota(jnp.int32, (t, 1), 0)
               + pl.program_id(0) * t)                       # (T, 1)
        valid = row < n_valid                                # (T, 1) bool
        x = jnp.where(valid, x, jnp.zeros_like(x))

    # Numerically stable logsumexp.  max / subtract stay in the input dtype
    # (2x packed VPU throughput for bf16 on v6e/v7x); exp and accumulation f32.
    m = jnp.max(x, axis=-1, keepdims=True)                   # (T, 1), input dtype
    p = jnp.exp((x - m).astype(jnp.float32))                 # (T, C) f32
    logz = m.astype(jnp.float32) + jnp.log(
        jnp.sum(p, axis=-1, keepdims=True))                  # (T, 1) f32

    # Smoothing term: sum_j(-log_preds[i,j]) = C*logz_i - sum_j x_ij.
    # sum_j x_ij is offloaded to the otherwise-idle MXU, accumulated in f32.
    ones_c = jnp.ones((c, 1), dtype=x.dtype)
    row_sum = jnp.dot(x, ones_c, preferred_element_type=jnp.float32)  # (T, 1)
    row_neglogp = c * logz - row_sum                          # (T, 1) f32

    # NLL term: nll_i = logz_i - x[i, target_i] via masked lane select.
    tgt = tgt_ref[...]                                        # (T, 1) int32
    col = jax.lax.broadcasted_iota(jnp.int32, (t, c), 1)      # (T, C)
    picked = jnp.sum(jnp.where(col == tgt, x, jnp.zeros_like(x)),
                     axis=-1, keepdims=True, dtype=jnp.float32)
    row_nll = logz - picked                                   # (T, 1) f32

    if ragged:
        validf = valid.astype(jnp.float32)
        smooth_ref[0, 0] = jnp.sum(row_neglogp * validf)
        nll_ref[0, 0] = jnp.sum(row_nll * validf)
    else:
        smooth_ref[0, 0] = jnp.sum(row_neglogp)
        nll_ref[0, 0] = jnp.sum(row_nll)


def label_smoothing_cross_entropy(output, target, eps: float = 0.1,
                                  reduction: str = "mean",
                                  tile_n: int | None = None):
    """Matches LabelSmoothingCrossEntropy.forward for reduction in {'mean','sum'}."""
    n, c = output.shape
    itemsize = jnp.dtype(output.dtype).itemsize
    # Sublane alignment for the row tile: 8 for f32, 16 for bf16, 32 for int8/fp8.
    sublane = max(8, 32 // itemsize)

    vmem_cap = _vmem_capacity_bytes()
    if tile_n is None:
        # VMEM accounting per element of the tile:
        #   2 double-buffered input tiles (input dtype)
        # + ~4 f32-sized elementwise temporaries (exp output, diff, iota, select).
        # Keep the total under ~62% of per-core VMEM so v7x (64 MiB) never
        # spills while v5e/v6e (128 MiB) still get 512-1024-row tiles.
        bytes_per_elem = 2 * itemsize + 4 * 4
        budget = (vmem_cap * 5) // 8
        tile_n = (budget // max(1, c * bytes_per_elem)) // sublane * sublane
    tile_n = max(sublane, _round_up(int(tile_n), sublane))
    tile_n = min(tile_n, _round_up(n, sublane))
    # TODO(synk): very large class counts (tile_n flooring at `sublane` rows,
    # which happens ~2x sooner on v7x's 64 MiB VMEM) want a second grid axis
    # over C with an online-logsumexp carry per row.
    # TODO(synk): for the compute-bound bf16/v7x config, consider
    # pipeline_mode=pl.Buffered(3) on the logits BlockSpec and
    # CORE_PARALLEL grid semantics (2 TCs per chip).

    num_tiles = int(pl.cdiv(n, tile_n))
    ragged = (n % tile_n) != 0
    n_pad = num_tiles * tile_n

    # Only the tiny target vector is padded; logits are never copied in HBM.
    tgt = target.astype(jnp.int32)
    if n_pad != n:
        tgt = jnp.pad(tgt, (0, n_pad - n))
    tgt2d = tgt.reshape(n_pad, 1)

    kernel = functools.partial(_lsce_kernel, n_valid=n, ragged=ragged)

    cost = pl.CostEstimate(
        flops=6 * n * c,
        transcendentals=n * c,
        bytes_accessed=n * c * itemsize + n_pad * 4 + num_tiles * 8,
    )

    smooth_parts, nll_parts = pl.pallas_call(
        kernel,
        grid=(num_tiles,),
        out_shape=(jax.ShapeDtypeStruct((num_tiles, 1), jnp.float32),
                   jax.ShapeDtypeStruct((num_tiles, 1), jnp.float32)),
        in_specs=[pl.BlockSpec((tile_n, c), lambda i: (i, 0)),
                  pl.BlockSpec((tile_n, 1), lambda i: (i, 0))],
        out_specs=(pl.BlockSpec((1, 1), lambda i: (i, 0),
                                memory_space=pltpu.MemorySpace.SMEM),
                   pl.BlockSpec((1, 1), lambda i: (i, 0),
                                memory_space=pltpu.MemorySpace.SMEM)),
        compiler_params=pltpu.CompilerParams(
            dimension_semantics=("parallel",),
            vmem_limit_bytes=int((vmem_cap * 3) // 4)),
        cost_estimate=cost,
    )(output, tgt2d)

    sum_neglogp = jnp.sum(smooth_parts)
    sum_nll = jnp.sum(nll_parts)

    if reduction == "sum":
        loss, nll = sum_neglogp, sum_nll
    elif reduction == "mean":
        loss, nll = sum_neglogp / n, sum_nll / n
    else:
        # TODO(synk): reduction='none' returns a per-row vector; not wired up here.
        raise NotImplementedError(f"reduction={reduction}")

    return loss * eps / c + (1.0 - eps) * nll


def _reference(output, target, eps=0.1, reduction="mean"):
    c = output.shape[-1]
    log_preds = jax.nn.log_softmax(output.astype(jnp.float32), axis=-1)
    if reduction == "sum":
        loss = -jnp.sum(log_preds)
        nll = -jnp.sum(jnp.take_along_axis(log_preds, target[:, None], axis=-1))
    else:
        loss = jnp.mean(-jnp.sum(log_preds, axis=-1))
        nll = jnp.mean(-jnp.take_along_axis(log_preds, target[:, None], axis=-1))
    return loss * eps / c + (1.0 - eps) * nll


if __name__ == "__main__":
    key = jax.random.PRNGKey(0)
    k1, k2, k3, k4, k5, k6 = jax.random.split(key, 6)

    # Case 1: single tile, mean reduction (f32).
    N, C = 8, 32
    x = jax.random.normal(k1, (N, C), dtype=jnp.float32)
    t = jax.random.randint(k2, (N,), 0, C, dtype=jnp.int32)
    loss = jax.block_until_ready(
        label_smoothing_cross_entropy(x, t, eps=0.1, reduction="mean"))
    ref = _reference(x, t, eps=0.1, reduction="mean")
    assert jnp.allclose(loss, ref, atol=1e-5, rtol=1e-5), (loss, ref)

    # Case 2: multi-tile grid with a ragged last tile, no HBM padding of logits
    # (N=20, TILE_N=8 -> 3 tiles, last tile masked in-kernel).
    N2, C2 = 20, 32
    x2 = jax.random.normal(k3, (N2, C2), dtype=jnp.float32)
    t2 = jax.random.randint(k4, (N2,), 0, C2, dtype=jnp.int32)
    loss2 = jax.block_until_ready(
        label_smoothing_cross_entropy(x2, t2, eps=0.1, reduction="mean", tile_n=8))
    ref2 = _reference(x2, t2, eps=0.1, reduction="mean")
    assert jnp.allclose(loss2, ref2, atol=1e-5, rtol=1e-5), (loss2, ref2)

    # Case 3: sum reduction.
    loss3 = jax.block_until_ready(
        label_smoothing_cross_entropy(x, t, eps=0.1, reduction="sum"))
    ref3 = _reference(x, t, eps=0.1, reduction="sum")
    assert jnp.allclose(loss3, ref3, atol=1e-4, rtol=1e-5), (loss3, ref3)

    # Case 4: bf16 logits (bf16 elementwise path + f32 accumulation), ragged.
    N4, C4 = 24, 128
    x4 = jax.random.normal(k5, (N4, C4), dtype=jnp.float32).astype(jnp.bfloat16)
    t4 = jax.random.randint(k6, (N4,), 0, C4, dtype=jnp.int32)
    loss4 = jax.block_until_ready(
        label_smoothing_cross_entropy(x4, t4, eps=0.1, reduction="mean", tile_n=16))
    ref4 = _reference(x4.astype(jnp.float32), t4, eps=0.1, reduction="mean")
    assert jnp.allclose(loss4, ref4, atol=5e-2, rtol=5e-2), (loss4, ref4)

    print("KERNEL_OK")
</pallas_src>

<mosaic_0001>
module attributes {stable_mosaic.version = 11 : i64} {
  func.func @_lsce_kernel(%arg0: i32, %arg1: memref<8x32xf32, #tpu.memory_space<vmem>>, %arg2: memref<8x1xi32, #tpu.memory_space<vmem>>, %arg3: memref<1x1xf32, #tpu.memory_space<smem>>, %arg4: memref<1x1xf32, #tpu.memory_space<smem>>) attributes {dimension_semantics = [#tpu.dimension_semantics<parallel>], iteration_bounds = array<i64: 1>, scalar_prefetch = 0 : i64, scratch_operands = 0 : i64, tpu.core_type = #tpu.core_type<tc>, window_params = [{transform_indices = @transform_0, window_bounds = array<i64: 8, 32>}, {transform_indices = @transform_1, window_bounds = array<i64: 8, 1>}, {transform_indices = @transform_2, window_bounds = array<i64: 1, 1>}, {transform_indices = @transform_3, window_bounds = array<i64: 1, 1>}]} {
    %c0 = arith.constant 0 : index
    %c0_0 = arith.constant 0 : index
    %0 = vector.load %arg1[%c0, %c0_0] : memref<8x32xf32, #tpu.memory_space<vmem>>, vector<8x32xf32>
    %cst = arith.constant dense<0xFF800000> : vector<8xf32>
    %1 = vector.multi_reduction <maximumf>, %0, %cst [1] : vector<8x32xf32> to vector<8xf32>
    %2 = vector.shape_cast %1 : vector<8xf32> to vector<8x1xf32>
    %3 = vector.broadcast %2 : vector<8x1xf32> to vector<8x32xf32>
    %4 = arith.subf %0, %3 : vector<8x32xf32>
    %5 = math.exp %4 : vector<8x32xf32>
    %cst_1 = arith.constant dense<0.000000e+00> : vector<8xf32>
    %6 = vector.multi_reduction <add>, %5, %cst_1 [1] : vector<8x32xf32> to vector<8xf32>
    %7 = vector.shape_cast %6 : vector<8xf32> to vector<8x1xf32>
    %8 = math.log %7 : vector<8x1xf32>
    %9 = arith.addf %2, %8 : vector<8x1xf32>
    %cst_2 = arith.constant 1.000000e+00 : f32
    %10 = vector.broadcast %cst_2 : f32 to vector<32x1xf32>
    %cst_3 = arith.constant dense<0.000000e+00> : vector<8x1xf32>
    %11 = tpu.matmul %0, %10, %cst_3 {dimension_numbers = #tpu.dot_dimension_numbers<[1], [0], [0], [1], [0, 0, 1, 1], [], []>} : vector<8x32xf32>, vector<32x1xf32>, vector<8x1xf32> -> vector<8x1xf32>
    %cst_4 = arith.constant 3.200000e+01 : f32
    %12 = vector.broadcast %cst_4 : f32 to vector<8x1xf32>
    %13 = arith.mulf %12, %9 : vector<8x1xf32>
    %14 = arith.subf %13, %11 : vector<8x1xf32>
    %c0_5 = arith.constant 0 : index
    %c0_6 = arith.constant 0 : index
    %15 = vector.load %arg2[%c0_5, %c0_6] : memref<8x1xi32, #tpu.memory_space<vmem>>, vector<8x1xi32>
    %16 = tpu.iota {dimensions = array<i32: 1>} : vector<8x32xi32>
    %17 = vector.broadcast %15 : vector<8x1xi32> to vector<8x32xi32>
    %18 = arith.cmpi eq, %16, %17 : vector<8x32xi32>
    %cst_7 = arith.constant 0.000000e+00 : f32
    %19 = vector.broadcast %cst_7 : f32 to vector<8x32xf32>
    %20 = arith.select %18, %0, %19 : vector<8x32xi1>, vector<8x32xf32>
    %cst_8 = arith.constant dense<0.000000e+00> : vector<8xf32>
    %21 = vector.multi_reduction <add>, %20, %cst_8 [1] : vector<8x32xf32> to vector<8xf32>
    %22 = vector.shape_cast %21 : vector<8xf32> to vector<8x1xf32>
    %23 = arith.subf %9, %22 : vector<8x1xf32>
    %24 = vector.shape_cast %14 : vector<8x1xf32> to vector<1x8x1xf32>
    %cst_9 = arith.constant dense<0.000000e+00> : vector<1xf32>
    %25 = vector.multi_reduction <add>, %24, %cst_9 [1, 2] : vector<1x8x1xf32> to vector<1xf32>
    %26 = vector.shape_cast %25 : vector<1xf32> to vector<1x1x1xf32>
    %27 = vector.extract %26[0, 0, 0] : f32 from vector<1x1x1xf32>
    %c0_10 = arith.constant 0 : index
    %c0_11 = arith.constant 0 : index
    %28 = memref.load %arg3[%c0_10, %c0_11] : memref<1x1xf32, #tpu.memory_space<smem>>
    memref.store %27, %arg3[%c0_10, %c0_11] : memref<1x1xf32, #tpu.memory_space<smem>>
    %29 = vector.shape_cast %23 : vector<8x1xf32> to vector<1x8x1xf32>
    %cst_12 = arith.constant dense<0.000000e+00> : vector<1xf32>
    %30 = vector.multi_reduction <add>, %29, %cst_12 [1, 2] : vector<1x8x1xf32> to vector<1xf32>
    %31 = vector.shape_cast %30 : vector<1xf32> to vector<1x1x1xf32>
    %32 = vector.extract %31[0, 0, 0] : f32 from vector<1x1x1xf32>
    %c0_13 = arith.constant 0 : index
    %c0_14 = arith.constant 0 : index
    %33 = memref.load %arg4[%c0_13, %c0_14] : memref<1x1xf32, #tpu.memory_space<smem>>
    memref.store %32, %arg4[%c0_13, %c0_14] : memref<1x1xf32, #tpu.memory_space<smem>>
    return
  }
  func.func @transform_0(%arg0: i32) -> (i32, i32) {
    %c0_i32 = arith.constant 0 : i32
    %c0_i32_0 = arith.constant 0 : i32
    return %arg0, %c0_i32 : i32, i32
  }
  func.func @transform_1(%arg0: i32) -> (i32, i32) {
    %c0_i32 = arith.constant 0 : i32
    %c0_i32_0 = arith.constant 0 : i32
    return %arg0, %c0_i32 : i32, i32
  }
  func.func @transform_2(%arg0: i32) -> (i32, i32) {
    %c0_i32 = arith.constant 0 : i32
    %c0_i32_0 = arith.constant 0 : i32
    return %arg0, %c0_i32 : i32, i32
  }
  func.func @transform_3(%arg0: i32) -> (i32, i32) {
    %c0_i32 = arith.constant 0 : i32
    %c0_i32_0 = arith.constant 0 : i32
    return %arg0, %c0_i32 : i32, i32
  }
}

</mosaic_0001>

<llo_original>
// kernel: tpu_custom_call.1
$region0: #{tpu_custom_call.1}
  #allocation0 [shape = 'u32[]', space=smem, size = 0x4, offset = 0x4, fixed_abs, tag = 'smem constant byte address 0x4 - core index']
  #allocation1 [shape = 'u32[144,128]{1,0:T(1,128)}', space=vmem, size = 0x12000, scoped, tag = 'internal scratch']
  %s0 = inlined_call_operand.vmem [shape: f32[8,32], index: 0, kind: input, shape index: {}]
  %s1 = inlined_call_operand.vmem [shape: s32[8,1], index: 1, kind: input, shape index: {}]
  %s2 = inlined_call_operand.hbm [shape: f32[1,1], index: 2, kind: output, shape index: {0}]
  %s3 = inlined_call_operand.hbm [shape: f32[1,1], index: 3, kind: output, shape index: {1}]
  %4 = xla_tuple %s2, %s3
  %s5 = sld [smem:[#allocation0]]
  $region26: #{tpu_custom_call.1} parent=0
    _
  %s7 = ssub.s32 1, %s5
  %s8 = scalar_select 0, %s7, %s5
  $region1: #{tpu_custom_call.1} parent=0
    #allocation2 [shape = 'u8[512]{0}', space=smem, size = 0x200, scoped, tag = 'output window, operand 0, single buffered']
    #allocation3 [shape = 's32[1]{0}', space=sflag, size = 0x4, scoped, tag = 'scoped memory for tpu_custom_call.1']
    #allocation4 [shape = 'u8[512]{0}', space=smem, size = 0x200, scoped, tag = 'output window, operand 1, single buffered']
    #allocation5 [shape = 's32[1]{0}', space=sflag, size = 0x4, scoped, tag = 'scoped memory for tpu_custom_call.1']
    %9 = vsyncpa [#allocation3], 0
    %10 = vsyncpa [#allocation5], 0
    // Predicated region
    $region2: #{tpu_custom_call.1} parent=1 // pred_check
      _
    $region3: #{tpu_custom_call.1} parent=1 // pred_check_branch
      %12 = sbr.rel (0) target = $region5
    $region4: #{tpu_custom_call.1} parent=1 // pred_region
      _
    $region5: #{tpu_custom_call.1} parent=1 // pred_fallthru
      _
    // Predicated region
    $region6: #{tpu_custom_call.1} parent=1 // pred_check
      _
    $region7: #{tpu_custom_call.1} parent=1 // pred_check_branch
      %14 = sbr.rel (0) target = $region9
    $region8: #{tpu_custom_call.1} parent=1 // pred_region
      _
    $region9: #{tpu_custom_call.1} parent=1 // pred_fallthru
      _
    %v15 = vld [vmem:[%s0] sm:$0xff]
    %vm16 = vcmask 261120
    %v17 = vsel %vm16, %v15, -inf
    %18 = vmax.xlane.f32.xlu0 %v17
    %v19 = vpop.xlane.xlu0 %18
    %v20 = vsub.f32 %v15, %v19
    %v21 = vmul.f32 %v20, 1.442695
    %v22 = vpow.pop %v21
    %v23 = vsel %vm16, %v22, 0.0
    %24 = vadd.xlane.f32.xlu0 %v23
    %v25 = vpop.xlane.xlu0 %24
    %v26 = vlog2.pop %v25
    %v27 = vmul.f32 %v26, 0.6931472
    %v28 = vadd.f32 %v19, %v27
    %v30 = vsel %vm16, %v15, 0
    %32 = vmatprep.subr.mxu0 0.0
    %33 = vmatpush1.msra.mxu0 1.0
    %34 = vmatprep.subr.mxu0 0.0
    %35 = vmatpush1.msra.mxu0 1.0
    %36 = vmatprep.subr.mxu0 0.0
    %37 = vmatpush1.msra.mxu0 1.0
    %38 = vmatprep.subr.mxu0 0.0
    %39 = vmatpush1.msra.mxu0 1.0
    %40 = vmatprep.subr.mxu0 0.0
    %41 = vmatpush1.msra.mxu0 0.0
    %42 = vmatprep.subr.mxu0 0.0
    %43 = vmatpush1.msra.mxu0 0.0
    %44 = vmatprep.subr.mxu0 0.0
    %45 = vmatpush1.msra.mxu0 0.0
    %46 = vmatprep.subr.mxu0 0.0
    %47 = vmatpush1.msra.mxu0 0.0
    %48 = vmatprep.subr.mxu0 0.0
    %49 = vmatpush1.msra.mxu0 0.0
    %50 = vmatprep.subr.mxu0 0.0
    %51 = vmatpush1.msra.mxu0 0.0
    %52 = vmatprep.subr.mxu0 0.0
    %53 = vmatpush1.msra.mxu0 0.0
    %54 = vmatprep.subr.mxu0 0.0
    %55 = vmatpush1.msra.mxu0 0.0
    %56 = vmatprep.subr.mxu0 0.0
    %57 = vmatpush1.msra.mxu0 0.0
    %58 = vmatprep.subr.mxu0 0.0
    %59 = vmatpush1.msra.mxu0 0.0
    %60 = vmatprep.subr.mxu0 0.0
    %61 = vmatpush1.msra.mxu0 0.0
    %62 = vmatprep.subr.mxu0 0.0
    %63 = vmatpush1.msra.mxu0 0.0
    %64 = vmatprep.subr.mxu0 0.0
    %65 = vmatpush1.msra.mxu0 0.0
    %66 = vmatprep.subr.mxu0 0.0
    %67 = vmatpush1.msra.mxu0 0.0
    %68 = vmatprep.subr.mxu0 0.0
    %69 = vmatpush1.msra.mxu0 0.0
    %70 = vmatprep.subr.mxu0 0.0
    %71 = vmatpush1.msra.mxu0 0.0
    %72 = vmatprep.subr.mxu0 0.0
    %73 = vmatpush1.msra.mxu0 0.0
    %74 = vmatprep.subr.mxu0 0.0
    %75 = vmatpush1.msra.mxu0 0.0
    %76 = vmatprep.subr.mxu0 0.0
    %77 = vmatpush1.msra.mxu0 0.0
    %78 = vmatprep.subr.mxu0 0.0
    %79 = vmatpush1.msra.mxu0 0.0
    %80 = vmatprep.subr.mxu0 0.0
    %81 = vmatpush1.msra.mxu0 0.0
    %82 = vmatprep.subr.mxu0 0.0
    %83 = vmatpush1.msra.mxu0 0.0
    %84 = vmatprep.subr.mxu0 0.0
    %85 = vmatpush1.msra.mxu0 0.0
    %86 = vmatprep.subr.mxu0 0.0
    %87 = vmatpush1.msra.mxu0 0.0
    %88 = vmatprep.subr.mxu0 0.0
    %89 = vmatpush1.msra.mxu0 0.0
    %90 = vmatprep.subr.mxu0 0.0
    %91 = vmatpush1.msra.mxu0 0.0
    %92 = vmatprep.subr.mxu0 0.0
    %93 = vmatpush1.msra.mxu0 0.0
    %94 = vmatprep.subr.mxu0 0.0
    %95 = vmatpush1.msra.mxu0 0.0
    %96 = vmatprep.mubr.f32.mxu0 0.0
    %97 = vmatmul.mubr.f32.gmra.mrb[0].mxu0 %v30
    %v98 = vpop.f32.mrb[0].mxu0
    %v99 = vadd.f32 0.0, %v98
    %v100 = vpop.f32.mrb[0].mxu0
    %101 = vdwg.mxu0
    %v102 = vmul.f32 %v28, 32.0
    %v103 = vsub.f32 %v102, %v99
    %v104 = vld [vmem:[%s1] sm:$0xff]
    %v105 = vlaneseq
    %v106 = vand.u32 %v105, 127
    %107 = vset.pattern.permute.xlu0 0
    %108 = vperm.xlu0 %107, %v104
    %v109 = vpop.permute.xlu0 %108
    %vm110 = vcmp.eq.s32.totalorder %v106, %v109
    %v111 = vsel %vm110, %v15, 0.0
    %v112 = vsel %vm16, %v111, 0.0
    %113 = vadd.xlane.f32.xlu0 %v112
    %v114 = vpop.xlane.xlu0 %113
    %v115 = vsub.f32 %v28, %v114
    %vm116 = vcmask 7168
    %v117 = vsel %vm116, %v103, 0.0
    %118 = vadd.xlane.f32.xlu0 %v117
    %v119 = vpop.xlane.xlu0 %118
    %v120 = vrot.slane %v119, 4
    %v121 = vadd.f32 %v119, %v120
    %v122 = vrot.slane %v121, 2
    %v123 = vadd.f32 %v121, %v122
    %v124 = vrot.slane %v123, 1
    %v125 = vadd.f32 %v123, %v124
    %s126 = vtos %v125
    %s127 = scalar_lea.smem [#allocation2], 0
    %128 = sst [smem:[%s127]] %s126
    %v129 = vsel %vm116, %v115, 0.0
    %130 = vadd.xlane.f32.xlu0 %v129
    %v131 = vpop.xlane.xlu0 %130
    %v132 = vrot.slane %v131, 4
    %v133 = vadd.f32 %v131, %v132
    %v134 = vrot.slane %v133, 2
    %v135 = vadd.f32 %v133, %v134
    %v136 = vrot.slane %v135, 1
    %v137 = vadd.f32 %v135, %v136
    %s138 = vtos %v137
    %s139 = scalar_lea.smem [#allocation4], 0
    %140 = sst [smem:[%s139]] %s138
    // Predicated region
    $region10: #{tpu_custom_call.1} parent=1 // pred_check
      _
    $region11: #{tpu_custom_call.1} parent=1 // pred_check_branch
      %142 = sbr.rel (0) target = $region13
    $region12: #{tpu_custom_call.1} parent=1 // pred_region
      %s144 = ssub.s32 16, 16
      %145 = vsyncadd [#allocation3], %s144
      %148 = dma.smem_to_hbm [#allocation2], 16, %s2, [#allocation3]
    $region13: #{tpu_custom_call.1} parent=1 // pred_fallthru
      _
    // Predicated region
    $region14: #{tpu_custom_call.1} parent=1 // pred_check
      _
    $region15: #{tpu_custom_call.1} parent=1 // pred_check_branch
      %150 = sbr.rel (0) target = $region17
    $region16: #{tpu_custom_call.1} parent=1 // pred_region
      %s152 = ssub.s32 16, 16
      %153 = vsyncadd [#allocation5], %s152
      %156 = dma.smem_to_hbm [#allocation4], 16, %s3, [#allocation5]
    $region17: #{tpu_custom_call.1} parent=1 // pred_fallthru
      _
    // Predicated region
    $region18: #{tpu_custom_call.1} parent=1 // pred_check
      _
    $region19: #{tpu_custom_call.1} parent=1 // pred_check_branch
      %158 = sbr.rel (0) target = $region21
    $region20: #{tpu_custom_call.1} parent=1 // pred_region
      %159 = dma.done [#allocation3], 16
    $region21: #{tpu_custom_call.1} parent=1 // pred_fallthru
      _
    // Predicated region
    $region22: #{tpu_custom_call.1} parent=1 // pred_check
      _
    $region23: #{tpu_custom_call.1} parent=1 // pred_check_branch
      %161 = sbr.rel (0) target = $region25
    $region24: #{tpu_custom_call.1} parent=1 // pred_region
      %162 = dma.done [#allocation5], 16
    $region25: #{tpu_custom_call.1} parent=1 // pred_fallthru
      _
    %163 = sfence
    %164 = vsyncpa [#allocation3], 1
    %165 = vsyncpa [#allocation5], 1

</llo_original>
